<compile_context>
chip_gen: v7x
topology: tpu7x:2x2x1
jax: 0.10.0
libtpu: 0.0.40
codegen_flags: <defaults>
</compile_context>

<pallas_src>
import functools

import jax
import jax.numpy as jnp
from jax import lax
from jax.experimental import pallas as pl
from jax.experimental.pallas import tpu as pltpu


def _attn_kernel(q_ref, k_ref, v_ref,
                 wq_ref, wk_ref, wv_ref,
                 wfc_ref, bfc_ref,
                 o_ref,
                 m_sc, l_sc, acc_sc, out_sc,
                 *, scale: float):
    h = pl.program_id(2)
    kv = pl.program_id(3)
    n_heads = pl.num_programs(2)
    n_kv = pl.num_programs(3)

    # ---- init the fc_out accumulator (bias) once per (batch, q-tile) ----
    @pl.when(jnp.logical_and(h == 0, kv == 0))
    def _():
        out_sc[...] = jnp.broadcast_to(bfc_ref[...], out_sc.shape)

    # ---- init per-head online-softmax state at the start of the kv sweep ----
    @pl.when(kv == 0)
    def _():
        m_sc[...] = jnp.full_like(m_sc, -jnp.inf)
        l_sc[...] = jnp.zeros_like(l_sc)
        acc_sc[...] = jnp.zeros_like(acc_sc)

    q = q_ref[0, 0]          # (TQ, D) bf16, contiguous per-head tile
    k = k_ref[0, 0]          # (TK, D) bf16
    v = v_ref[0, 0]          # (TK, D) bf16

    # Per-head projections (weights pre-transposed -> x @ W_t == x @ W.T).
    # The 1/sqrt(embed_dim) scale is folded into the small Q tile, not the energy.
    qh = lax.dot_general(q, wq_ref[...], (((1,), (0,)), ((), ())),
                         preferred_element_type=jnp.float32) * scale   # (TQ, D) f32
    kh = lax.dot_general(k, wk_ref[...], (((1,), (0,)), ((), ())),
                         preferred_element_type=jnp.float32)           # (TK, D) f32
    vh = lax.dot_general(v, wv_ref[...], (((1,), (0,)), ((), ())),
                         preferred_element_type=jnp.float32)           # (TK, D) f32

    # Energy: contract the D axes directly -> no materialized K transpose.
    s = lax.dot_general(qh.astype(jnp.bfloat16), kh.astype(jnp.bfloat16),
                        (((1,), (1,)), ((), ())),
                        preferred_element_type=jnp.float32)            # (TQ, TK) f32

    # ---- online softmax over the key axis (f32 math) ----
    m_prev = m_sc[...]
    m_new = jnp.maximum(m_prev, jnp.max(s, axis=-1, keepdims=True))
    alpha = jnp.exp(m_prev - m_new)
    p = jnp.exp(s - m_new)                                             # (TQ, TK) f32
    l_sc[...] = alpha * l_sc[...] + jnp.sum(p, axis=-1, keepdims=True)
    acc_sc[...] = alpha * acc_sc[...] + lax.dot_general(
        p.astype(jnp.bfloat16), vh.astype(jnp.bfloat16),
        (((1,), (0,)), ((), ())), preferred_element_type=jnp.float32)  # (TQ, D)
    m_sc[...] = m_new

    # ---- end of kv sweep: fold this head's output through its slice of fc_out ----
    @pl.when(kv == n_kv - 1)
    def _():
        head_out = acc_sc[...] * pl.reciprocal(l_sc[...], approx=True)  # (TQ, D) f32
        out_sc[...] += lax.dot_general(
            head_out.astype(jnp.bfloat16), wfc_ref[0],                  # (D, E)
            (((1,), (0,)), ((), ())), preferred_element_type=jnp.float32)

    # ---- last head, last kv tile: single lane-dense store of the (TQ, E) tile ----
    @pl.when(jnp.logical_and(h == n_heads - 1, kv == n_kv - 1))
    def _():
        o_ref[0] = out_sc[...].astype(o_ref.dtype)


def self_attention_pallas(values, keys, query, params, *, heads: int,
                          q_tile: int = 256, kv_tile: int = 512):
    """values/keys/query: (N, L, E) float32. params: torch-layout weights."""
    N, Lq, E = query.shape
    Lv, Lk = values.shape[1], keys.shape[1]
    assert Lv == Lk, "values and keys must share sequence length"
    D = E // heads
    assert D * heads == E, "embed_dim must be divisible by heads"

    TQ = min(q_tile, Lq)
    TK = min(kv_tile, Lk)
    assert Lq % TQ == 0 and Lk % TK == 0, "sequence lengths must divide tile sizes"
    # TODO(synk): pad ragged / non-divisible sequence lengths instead of asserting.

    # Head-major contiguous layout (N, H, L, D), bf16 MXU operands.
    def to_heads(x):
        n, l, _ = x.shape
        return x.reshape(n, l, heads, D).transpose(0, 2, 1, 3).astype(jnp.bfloat16)

    q_h, k_h, v_h = to_heads(query), to_heads(keys), to_heads(values)

    # Pre-transposed weights: kernel computes x @ W_t, never transposes in-kernel.
    wq_t = params["wq"].T.astype(jnp.bfloat16)            # (D, D)
    wk_t = params["wk"].T.astype(jnp.bfloat16)            # (D, D)
    wv_t = params["wv"].T.astype(jnp.bfloat16)            # (D, D)
    # fc_out weight transposed and split per head along its input axis: (H, D, E).
    wfc_t = params["wfc"].T.reshape(heads, D, E).astype(jnp.bfloat16)
    bfc = params["bfc"].reshape(1, E).astype(jnp.float32)

    scale = 1.0 / (float(E) ** 0.5)   # module scales by 1/sqrt(embed_dim)
    kernel = functools.partial(_attn_kernel, scale=scale)

    grid = (N, Lq // TQ, heads, Lk // TK)

    grid_spec = pltpu.PrefetchScalarGridSpec(
        num_scalar_prefetch=0,
        grid=grid,
        in_specs=[
            pl.BlockSpec((1, 1, TQ, D), lambda n, qi, h, kv: (n, h, qi, 0)),  # Q
            pl.BlockSpec((1, 1, TK, D), lambda n, qi, h, kv: (n, h, kv, 0)),  # K
            pl.BlockSpec((1, 1, TK, D), lambda n, qi, h, kv: (n, h, kv, 0)),  # V
            pl.BlockSpec((D, D), lambda n, qi, h, kv: (0, 0)),                # Wq^T
            pl.BlockSpec((D, D), lambda n, qi, h, kv: (0, 0)),                # Wk^T
            pl.BlockSpec((D, D), lambda n, qi, h, kv: (0, 0)),                # Wv^T
            pl.BlockSpec((1, D, E), lambda n, qi, h, kv: (h, 0, 0)),          # Wfc^T[h]
            pl.BlockSpec((1, E), lambda n, qi, h, kv: (0, 0)),                # bias
        ],
        out_specs=pl.BlockSpec((1, TQ, E), lambda n, qi, h, kv: (n, qi, 0)),
        scratch_shapes=[
            pltpu.VMEM((TQ, 1), jnp.float32),   # running max
            pltpu.VMEM((TQ, 1), jnp.float32),   # running denom
            pltpu.VMEM((TQ, D), jnp.float32),   # per-head attn @ V accumulator
            pltpu.VMEM((TQ, E), jnp.float32),   # fc_out accumulator
        ],
    )

    return pl.pallas_call(
        kernel,
        out_shape=jax.ShapeDtypeStruct((N, Lq, E), query.dtype),
        grid_spec=grid_spec,
        compiler_params=pltpu.CompilerParams(
            dimension_semantics=("parallel", "parallel", "arbitrary", "arbitrary"),
            vmem_limit_bytes=64 * 1024 * 1024,
        ),
    )(q_h, k_h, v_h, wq_t, wk_t, wv_t, wfc_t, bfc)


def self_attention_reference(values, keys, query, params, *, heads: int):
    """Pure-JAX f32 reference matching the PyTorch forward exactly."""
    N, Lq, E = query.shape
    Lv, Lk = values.shape[1], keys.shape[1]
    D = E // heads
    v = values.reshape(N, Lv, heads, D)
    k = keys.reshape(N, Lk, heads, D)
    q = query.reshape(N, Lq, heads, D)
    v = jnp.einsum("nlhd,ed->nlhe", v, params["wv"])
    k = jnp.einsum("nlhd,ed->nlhe", k, params["wk"])
    q = jnp.einsum("nlhd,ed->nlhe", q, params["wq"])
    energy = jnp.einsum("nqhd,nkhd->nhqk", q, k) / (E ** 0.5)
    attn = jax.nn.softmax(energy, axis=3)
    out = jnp.einsum("nhql,nlhd->nqhd", attn, v).reshape(N, Lq, E)
    return jnp.einsum("nqe,fe->nqf", out, params["wfc"]) + params["bfc"]


if __name__ == "__main__":
    # small shapes consistent with the module
    N, L, E, H = 2, 8, 32, 4      # batch, seq, embed_dim, heads
    D = E // H

    key = jax.random.PRNGKey(0)
    kv_, kk_, kq_, kwv, kwk, kwq, kwfc, kbfc = jax.random.split(key, 8)

    values = jax.random.normal(kv_, (N, L, E), dtype=jnp.float32)
    keys_in = jax.random.normal(kk_, (N, L, E), dtype=jnp.float32)
    query = jax.random.normal(kq_, (N, L, E), dtype=jnp.float32)

    # deterministic parameter init (torch Linear weight layout: (out, in))
    params = {
        "wv": jax.random.normal(kwv, (D, D), dtype=jnp.float32) / (D ** 0.5),
        "wk": jax.random.normal(kwk, (D, D), dtype=jnp.float32) / (D ** 0.5),
        "wq": jax.random.normal(kwq, (D, D), dtype=jnp.float32) / (D ** 0.5),
        "wfc": jax.random.normal(kwfc, (E, E), dtype=jnp.float32) / (E ** 0.5),
        "bfc": jax.random.normal(kbfc, (E,), dtype=jnp.float32) * 0.01,
    }

    out = self_attention_pallas(values, keys_in, query, params, heads=H)
    out = jax.block_until_ready(out)

    ref = self_attention_reference(values, keys_in, query, params, heads=H)
    # bf16 MXU operands (f32 accumulation) + approx reciprocal -> looser tolerance
    max_diff = float(jnp.max(jnp.abs(out - ref)))
    assert jnp.allclose(out, ref, atol=1e-1, rtol=1e-1), (
        f"mismatch vs reference, max |diff| = {max_diff}")

    print("KERNEL_OK")
</pallas_src>

<mosaic_0001>
module attributes {stable_mosaic.version = 11 : i64} {
  func.func @_attn_kernel(%arg0: i32, %arg1: i32, %arg2: i32, %arg3: i32, %arg4: memref<1x1x8x8xbf16, #tpu.memory_space<vmem>>, %arg5: memref<1x1x8x8xbf16, #tpu.memory_space<vmem>>, %arg6: memref<1x1x8x8xbf16, #tpu.memory_space<vmem>>, %arg7: memref<8x8xbf16, #tpu.memory_space<vmem>>, %arg8: memref<8x8xbf16, #tpu.memory_space<vmem>>, %arg9: memref<8x8xbf16, #tpu.memory_space<vmem>>, %arg10: memref<1x8x32xbf16, #tpu.memory_space<vmem>>, %arg11: memref<1x32xf32, #tpu.memory_space<vmem>>, %arg12: memref<1x8x32xf32, #tpu.memory_space<vmem>>, %arg13: memref<8x1xf32, #tpu.memory_space<vmem>>, %arg14: memref<8x1xf32, #tpu.memory_space<vmem>>, %arg15: memref<8x8xf32, #tpu.memory_space<vmem>>, %arg16: memref<8x32xf32, #tpu.memory_space<vmem>>) attributes {dimension_semantics = [#tpu.dimension_semantics<parallel>, #tpu.dimension_semantics<parallel>, #tpu.dimension_semantics<arbitrary>, #tpu.dimension_semantics<arbitrary>], iteration_bounds = array<i64: 2, 1, 4, 1>, scalar_prefetch = 0 : i64, scratch_operands = 4 : i64, tpu.core_type = #tpu.core_type<tc>, window_params = [{transform_indices = @transform_0, window_bounds = array<i64: 1, 1, 8, 8>}, {transform_indices = @transform_1, window_bounds = array<i64: 1, 1, 8, 8>}, {transform_indices = @transform_2, window_bounds = array<i64: 1, 1, 8, 8>}, {pipeline_mode = #tpu.pipeline_mode<synchronous>, transform_indices = @transform_3, window_bounds = array<i64: 8, 8>}, {pipeline_mode = #tpu.pipeline_mode<synchronous>, transform_indices = @transform_4, window_bounds = array<i64: 8, 8>}, {pipeline_mode = #tpu.pipeline_mode<synchronous>, transform_indices = @transform_5, window_bounds = array<i64: 8, 8>}, {transform_indices = @transform_6, window_bounds = array<i64: 1, 8, 32>}, {pipeline_mode = #tpu.pipeline_mode<synchronous>, transform_indices = @transform_7, window_bounds = array<i64: 1, 32>}, {transform_indices = @transform_8, window_bounds = array<i64: 1, 8, 32>}]} {
    %c0_i32 = arith.constant 0 : i32
    %0 = arith.cmpi eq, %arg2, %c0_i32 : i32
    %c0_i32_0 = arith.constant 0 : i32
    %1 = arith.cmpi eq, %arg3, %c0_i32_0 : i32
    %2 = arith.andi %0, %1 : i1
    %3 = arith.extui %2 : i1 to i32
    %c0_i32_1 = arith.constant 0 : i32
    %4 = arith.cmpi ne, %3, %c0_i32_1 : i32
    scf.if %4 {
      %c0_44 = arith.constant 0 : index
      %c0_45 = arith.constant 0 : index
      %57 = vector.load %arg11[%c0_44, %c0_45] : memref<1x32xf32, #tpu.memory_space<vmem>>, vector<1x32xf32>
      %58 = vector.shape_cast %57 : vector<1x32xf32> to vector<1x32xf32>
      %59 = vector.broadcast %58 : vector<1x32xf32> to vector<8x32xf32>
      %c0_46 = arith.constant 0 : index
      %c0_47 = arith.constant 0 : index
      %60 = vector.load %arg16[%c0_46, %c0_47] : memref<8x32xf32, #tpu.memory_space<vmem>>, vector<8x32xf32>
      tpu.vector_store %arg16[%c0_46, %c0_47], %59 {strides = array<i32>} : memref<8x32xf32, #tpu.memory_space<vmem>>, vector<8x32xf32>,
    } else {
    }
    %c0_i32_2 = arith.constant 0 : i32
    %5 = arith.cmpi eq, %arg3, %c0_i32_2 : i32
    %6 = arith.extui %5 : i1 to i32
    %c0_i32_3 = arith.constant 0 : i32
    %7 = arith.cmpi ne, %6, %c0_i32_3 : i32
    scf.if %7 {
      %cst_44 = arith.constant 0xFF800000 : f32
      %57 = vector.broadcast %cst_44 : f32 to vector<8x1xf32>
      %c0_45 = arith.constant 0 : index
      %c0_46 = arith.constant 0 : index
      %58 = vector.load %arg13[%c0_45, %c0_46] : memref<8x1xf32, #tpu.memory_space<vmem>>, vector<8x1xf32>
      tpu.vector_store %arg13[%c0_45, %c0_46], %57 {strides = array<i32>} : memref<8x1xf32, #tpu.memory_space<vmem>>, vector<8x1xf32>,
      %cst_47 = arith.constant 0.000000e+00 : f32
      %59 = vector.broadcast %cst_47 : f32 to vector<8x1xf32>
      %c0_48 = arith.constant 0 : index
      %c0_49 = arith.constant 0 : index
      %60 = vector.load %arg14[%c0_48, %c0_49] : memref<8x1xf32, #tpu.memory_space<vmem>>, vector<8x1xf32>
      tpu.vector_store %arg14[%c0_48, %c0_49], %59 {strides = array<i32>} : memref<8x1xf32, #tpu.memory_space<vmem>>, vector<8x1xf32>,
      %cst_50 = arith.constant 0.000000e+00 : f32
      %61 = vector.broadcast %cst_50 : f32 to vector<8x8xf32>
      %c0_51 = arith.constant 0 : index
      %c0_52 = arith.constant 0 : index
      %62 = vector.load %arg15[%c0_51, %c0_52] : memref<8x8xf32, #tpu.memory_space<vmem>>, vector<8x8xf32>
      tpu.vector_store %arg15[%c0_51, %c0_52], %61 {strides = array<i32>} : memref<8x8xf32, #tpu.memory_space<vmem>>, vector<8x8xf32>,
    } else {
    }
    %c0 = arith.constant 0 : index
    %c0_4 = arith.constant 0 : index
    %c0_5 = arith.constant 0 : index
    %c0_6 = arith.constant 0 : index
    %8 = vector.load %arg4[%c0, %c0_4, %c0_5, %c0_6] : memref<1x1x8x8xbf16, #tpu.memory_space<vmem>>, vector<1x1x8x8xbf16>
    %9 = vector.shape_cast %8 : vector<1x1x8x8xbf16> to vector<8x8xbf16>
    %c0_7 = arith.constant 0 : index
    %c0_8 = arith.constant 0 : index
    %c0_9 = arith.constant 0 : index
    %c0_10 = arith.constant 0 : index
    %10 = vector.load %arg5[%c0_7, %c0_8, %c0_9, %c0_10] : memref<1x1x8x8xbf16, #tpu.memory_space<vmem>>, vector<1x1x8x8xbf16>
    %11 = vector.shape_cast %10 : vector<1x1x8x8xbf16> to vector<8x8xbf16>
    %c0_11 = arith.constant 0 : index
    %c0_12 = arith.constant 0 : index
    %c0_13 = arith.constant 0 : index
    %c0_14 = arith.constant 0 : index
    %12 = vector.load %arg6[%c0_11, %c0_12, %c0_13, %c0_14] : memref<1x1x8x8xbf16, #tpu.memory_space<vmem>>, vector<1x1x8x8xbf16>
    %13 = vector.shape_cast %12 : vector<1x1x8x8xbf16> to vector<8x8xbf16>
    %c0_15 = arith.constant 0 : index
    %c0_16 = arith.constant 0 : index
    %14 = vector.load %arg7[%c0_15, %c0_16] : memref<8x8xbf16, #tpu.memory_space<vmem>>, vector<8x8xbf16>
    %cst = arith.constant dense<0.000000e+00> : vector<8x8xf32>
    %15 = tpu.matmul %9, %14, %cst {dimension_numbers = #tpu.dot_dimension_numbers<[1], [0], [0], [1], [0, 0, 1, 1], [], []>} : vector<8x8xbf16>, vector<8x8xbf16>, vector<8x8xf32> -> vector<8x8xf32>
    %cst_17 = arith.constant 0.176776692 : f32
    %16 = vector.broadcast %cst_17 : f32 to vector<8x8xf32>
    %17 = arith.mulf %15, %16 : vector<8x8xf32>
    %c0_18 = arith.constant 0 : index
    %c0_19 = arith.constant 0 : index
    %18 = vector.load %arg8[%c0_18, %c0_19] : memref<8x8xbf16, #tpu.memory_space<vmem>>, vector<8x8xbf16>
    %cst_20 = arith.constant dense<0.000000e+00> : vector<8x8xf32>
    %19 = tpu.matmul %11, %18, %cst_20 {dimension_numbers = #tpu.dot_dimension_numbers<[1], [0], [0], [1], [0, 0, 1, 1], [], []>} : vector<8x8xbf16>, vector<8x8xbf16>, vector<8x8xf32> -> vector<8x8xf32>
    %c0_21 = arith.constant 0 : index
    %c0_22 = arith.constant 0 : index
    %20 = vector.load %arg9[%c0_21, %c0_22] : memref<8x8xbf16, #tpu.memory_space<vmem>>, vector<8x8xbf16>
    %cst_23 = arith.constant dense<0.000000e+00> : vector<8x8xf32>
    %21 = tpu.matmul %13, %20, %cst_23 {dimension_numbers = #tpu.dot_dimension_numbers<[1], [0], [0], [1], [0, 0, 1, 1], [], []>} : vector<8x8xbf16>, vector<8x8xbf16>, vector<8x8xf32> -> vector<8x8xf32>
    %22 = arith.truncf %17 : vector<8x8xf32> to vector<8x8xbf16>
    %23 = arith.truncf %19 : vector<8x8xf32> to vector<8x8xbf16>
    %cst_24 = arith.constant dense<0.000000e+00> : vector<8x8xf32>
    %24 = tpu.matmul %22, %23, %cst_24 {dimension_numbers = #tpu.dot_dimension_numbers<[1], [1], [0], [0], [0, 0, 1, 0], [], []>} : vector<8x8xbf16>, vector<8x8xbf16>, vector<8x8xf32> -> vector<8x8xf32>
    %c0_25 = arith.constant 0 : index
    %c0_26 = arith.constant 0 : index
    %25 = vector.load %arg13[%c0_25, %c0_26] : memref<8x1xf32, #tpu.memory_space<vmem>>, vector<8x1xf32>
    %cst_27 = arith.constant dense<0xFF800000> : vector<8xf32>
    %26 = vector.multi_reduction <maximumf>, %24, %cst_27 [1] : vector<8x8xf32> to vector<8xf32>
    %27 = vector.shape_cast %26 : vector<8xf32> to vector<8x1xf32>
    %28 = arith.maximumf %25, %27 : vector<8x1xf32>
    %29 = arith.subf %25, %28 : vector<8x1xf32>
    %30 = math.exp %29 : vector<8x1xf32>
    %31 = vector.broadcast %28 : vector<8x1xf32> to vector<8x8xf32>
    %32 = arith.subf %24, %31 : vector<8x8xf32>
    %33 = math.exp %32 : vector<8x8xf32>
    %c0_28 = arith.constant 0 : index
    %c0_29 = arith.constant 0 : index
    %34 = vector.load %arg14[%c0_28, %c0_29] : memref<8x1xf32, #tpu.memory_space<vmem>>, vector<8x1xf32>
    %35 = arith.mulf %30, %34 : vector<8x1xf32>
    %cst_30 = arith.constant dense<0.000000e+00> : vector<8xf32>
    %36 = vector.multi_reduction <add>, %33, %cst_30 [1] : vector<8x8xf32> to vector<8xf32>
    %37 = vector.shape_cast %36 : vector<8xf32> to vector<8x1xf32>
    %38 = arith.addf %35, %37 : vector<8x1xf32>
    %c0_31 = arith.constant 0 : index
    %c0_32 = arith.constant 0 : index
    %39 = vector.load %arg14[%c0_31, %c0_32] : memref<8x1xf32, #tpu.memory_space<vmem>>, vector<8x1xf32>
    tpu.vector_store %arg14[%c0_31, %c0_32], %38 {strides = array<i32>} : memref<8x1xf32, #tpu.memory_space<vmem>>, vector<8x1xf32>,
    %c0_33 = arith.constant 0 : index
    %c0_34 = arith.constant 0 : index
    %40 = vector.load %arg15[%c0_33, %c0_34] : memref<8x8xf32, #tpu.memory_space<vmem>>, vector<8x8xf32>
    %41 = vector.broadcast %30 : vector<8x1xf32> to vector<8x8xf32>
    %42 = arith.mulf %41, %40 : vector<8x8xf32>
    %43 = arith.truncf %33 : vector<8x8xf32> to vector<8x8xbf16>
    %44 = arith.truncf %21 : vector<8x8xf32> to vector<8x8xbf16>
    %cst_35 = arith.constant dense<0.000000e+00> : vector<8x8xf32>
    %45 = tpu.matmul %43, %44, %cst_35 {dimension_numbers = #tpu.dot_dimension_numbers<[1], [0], [0], [1], [0, 0, 1, 1], [], []>} : vector<8x8xbf16>, vector<8x8xbf16>, vector<8x8xf32> -> vector<8x8xf32>
    %46 = arith.addf %42, %45 : vector<8x8xf32>
    %c0_36 = arith.constant 0 : index
    %c0_37 = arith.constant 0 : index
    %47 = vector.load %arg15[%c0_36, %c0_37] : memref<8x8xf32, #tpu.memory_space<vmem>>, vector<8x8xf32>
    tpu.vector_store %arg15[%c0_36, %c0_37], %46 {strides = array<i32>} : memref<8x8xf32, #tpu.memory_space<vmem>>, vector<8x8xf32>,
    %c0_38 = arith.constant 0 : index
    %c0_39 = arith.constant 0 : index
    %48 = vector.load %arg13[%c0_38, %c0_39] : memref<8x1xf32, #tpu.memory_space<vmem>>, vector<8x1xf32>
    tpu.vector_store %arg13[%c0_38, %c0_39], %28 {strides = array<i32>} : memref<8x1xf32, #tpu.memory_space<vmem>>, vector<8x1xf32>,
    %c0_i32_40 = arith.constant 0 : i32
    %49 = arith.cmpi eq, %arg3, %c0_i32_40 : i32
    %50 = arith.extui %49 : i1 to i32
    %c0_i32_41 = arith.constant 0 : i32
    %51 = arith.cmpi ne, %50, %c0_i32_41 : i32
    scf.if %51 {
      %c0_44 = arith.constant 0 : index
      %c0_45 = arith.constant 0 : index
      %57 = vector.load %arg15[%c0_44, %c0_45] : memref<8x8xf32, #tpu.memory_space<vmem>>, vector<8x8xf32>
      %c0_46 = arith.constant 0 : index
      %c0_47 = arith.constant 0 : index
      %58 = vector.load %arg14[%c0_46, %c0_47] : memref<8x1xf32, #tpu.memory_space<vmem>>, vector<8x1xf32>
      %59 = tpu.reciprocal %58 {approx = true} : vector<8x1xf32> -> vector<8x1xf32>
      %60 = vector.broadcast %59 : vector<8x1xf32> to vector<8x8xf32>
      %61 = arith.mulf %57, %60 : vector<8x8xf32>
      %c0_48 = arith.constant 0 : index
      %c0_49 = arith.constant 0 : index
      %62 = vector.load %arg16[%c0_48, %c0_49] : memref<8x32xf32, #tpu.memory_space<vmem>>, vector<8x32xf32>
      %63 = arith.truncf %61 : vector<8x8xf32> to vector<8x8xbf16>
      %c0_50 = arith.constant 0 : index
      %c0_51 = arith.constant 0 : index
      %c0_52 = arith.constant 0 : index
      %64 = vector.load %arg10[%c0_50, %c0_51, %c0_52] : memref<1x8x32xbf16, #tpu.memory_space<vmem>>, vector<1x8x32xbf16>
      %65 = vector.shape_cast %64 : vector<1x8x32xbf16> to vector<8x32xbf16>
      %cst_53 = arith.constant dense<0.000000e+00> : vector<8x32xf32>
      %66 = tpu.matmul %63, %65, %cst_53 {dimension_numbers = #tpu.dot_dimension_numbers<[1], [0], [0], [1], [0, 0, 1, 1], [], []>} : vector<8x8xbf16>, vector<8x32xbf16>, vector<8x32xf32> -> vector<8x32xf32>
      %67 = arith.addf %62, %66 : vector<8x32xf32>
      %c0_54 = arith.constant 0 : index
      %c0_55 = arith.constant 0 : index
      %68 = vector.load %arg16[%c0_54, %c0_55] : memref<8x32xf32, #tpu.memory_space<vmem>>, vector<8x32xf32>
      tpu.vector_store %arg16[%c0_54, %c0_55], %67 {strides = array<i32>} : memref<8x32xf32, #tpu.memory_space<vmem>>, vector<8x32xf32>,
    } else {
    }
    %c3_i32 = arith.constant 3 : i32
    %52 = arith.cmpi eq, %arg2, %c3_i32 : i32
    %c0_i32_42 = arith.constant 0 : i32
    %53 = arith.cmpi eq, %arg3, %c0_i32_42 : i32
    %54 = arith.andi %52, %53 : i1
    %55 = arith.extui %54 : i1 to i32
    %c0_i32_43 = arith.constant 0 : i32
    %56 = arith.cmpi ne, %55, %c0_i32_43 : i32
    scf.if %56 {
      %c0_44 = arith.constant 0 : index
      %c0_45 = arith.constant 0 : index
      %57 = vector.load %arg16[%c0_44, %c0_45] : memref<8x32xf32, #tpu.memory_space<vmem>>, vector<8x32xf32>
      %c0_46 = arith.constant 0 : index
      %c0_47 = arith.constant 0 : index
      %c0_48 = arith.constant 0 : index
      %58 = vector.load %arg12[%c0_46, %c0_47, %c0_48] : memref<1x8x32xf32, #tpu.memory_space<vmem>>, vector<1x8x32xf32>
      %59 = vector.shape_cast %58 : vector<1x8x32xf32> to vector<8x32xf32>
      %60 = vector.shape_cast %57 : vector<8x32xf32> to vector<1x8x32xf32>
      tpu.vector_store %arg12[%c0_46, %c0_47, %c0_48], %60 {strides = array<i32>} : memref<1x8x32xf32, #tpu.memory_space<vmem>>, vector<1x8x32xf32>,
    } else {
    }
    return
  }
  func.func @transform_0(%arg0: i32, %arg1: i32, %arg2: i32, %arg3: i32) -> (i32, i32, i32, i32) {
    %c0_i32 = arith.constant 0 : i32
    %c0_i32_0 = arith.constant 0 : i32
    return %arg0, %arg2, %arg1, %c0_i32 : i32, i32, i32, i32
  }
  func.func @transform_1(%arg0: i32, %arg1: i32, %arg2: i32, %arg3: i32) -> (i32, i32, i32, i32) {
    %c0_i32 = arith.constant 0 : i32
    %c0_i32_0 = arith.constant 0 : i32
    return %arg0, %arg2, %arg3, %c0_i32 : i32, i32, i32, i32
  }
  func.func @transform_2(%arg0: i32, %arg1: i32, %arg2: i32, %arg3: i32) -> (i32, i32, i32, i32) {
    %c0_i32 = arith.constant 0 : i32
    %c0_i32_0 = arith.constant 0 : i32
    return %arg0, %arg2, %arg3, %c0_i32 : i32, i32, i32, i32
  }
  func.func @transform_3(%arg0: i32, %arg1: i32, %arg2: i32, %arg3: i32) -> (i32, i32) {
    %c0_i32 = arith.constant 0 : i32
    %c0_i32_0 = arith.constant 0 : i32
    %c0_i32_1 = arith.constant 0 : i32
    return %c0_i32, %c0_i32_0 : i32, i32
  }
  func.func @transform_4(%arg0: i32, %arg1: i32, %arg2: i32, %arg3: i32) -> (i32, i32) {
    %c0_i32 = arith.constant 0 : i32
    %c0_i32_0 = arith.constant 0 : i32
    %c0_i32_1 = arith.constant 0 : i32
    return %c0_i32, %c0_i32_0 : i32, i32
  }
  func.func @transform_5(%arg0: i32, %arg1: i32, %arg2: i32, %arg3: i32) -> (i32, i32) {
    %c0_i32 = arith.constant 0 : i32
    %c0_i32_0 = arith.constant 0 : i32
    %c0_i32_1 = arith.constant 0 : i32
    return %c0_i32, %c0_i32_0 : i32, i32
  }
  func.func @transform_6(%arg0: i32, %arg1: i32, %arg2: i32, %arg3: i32) -> (i32, i32, i32) {
    %c0_i32 = arith.constant 0 : i32
    %c0_i32_0 = arith.constant 0 : i32
    %c0_i32_1 = arith.constant 0 : i32
    return %arg2, %c0_i32, %c0_i32_0 : i32, i32, i32
  }
  func.func @transform_7(%arg0: i32, %arg1: i32, %arg2: i32, %arg3: i32) -> (i32, i32) {
    %c0_i32 = arith.constant 0 : i32
    %c0_i32_0 = arith.constant 0 : i32
    %c0_i32_1 = arith.constant 0 : i32
    return %c0_i32, %c0_i32_0 : i32, i32
  }
  func.func @transform_8(%arg0: i32, %arg1: i32, %arg2: i32, %arg3: i32) -> (i32, i32, i32) {
    %c0_i32 = arith.constant 0 : i32
    %c0_i32_0 = arith.constant 0 : i32
    return %arg0, %arg1, %c0_i32 : i32, i32, i32
  }
}

</mosaic_0001>

<llo_original>
// kernel: tpu_custom_call.1
$region0: #{tpu_custom_call.1}
  #allocation0 [shape = 'u32[]', space=smem, size = 0x4, offset = 0x4, fixed_abs, tag = 'smem constant byte address 0x4 - core index']
  #allocation1 [shape = 'u32[144,128]{1,0:T(1,128)}', space=vmem, size = 0x12000, scoped, tag = 'internal scratch']
  #allocation2 [shape = 'f32[8,1]{1,0:T(8,128)}', space=vmem, size = 0x1000, scoped, tag = 'scratch operand']
  #allocation3 [shape = 'f32[8,1]{1,0:T(8,128)}', space=vmem, size = 0x1000, scoped, tag = 'scratch operand']
  #allocation4 [shape = 'f32[8,8]{1,0:T(8,128)}', space=vmem, size = 0x1000, scoped, tag = 'scratch operand']
  #allocation5 [shape = 'f32[8,32]{1,0:T(8,128)}', space=vmem, size = 0x1000, scoped, tag = 'scratch operand']
  %s0 = inlined_call_operand.hbm [shape: bf16[2,4,8,8], index: 0, kind: input, shape index: {}]
  %s1 = inlined_call_operand.hbm [shape: bf16[2,4,8,8], index: 1, kind: input, shape index: {}]
  %s2 = inlined_call_operand.hbm [shape: bf16[2,4,8,8], index: 2, kind: input, shape index: {}]
  %s3 = inlined_call_operand.hbm [shape: bf16[8,8], index: 3, kind: input, shape index: {}]
  %s4 = inlined_call_operand.hbm [shape: bf16[8,8], index: 4, kind: input, shape index: {}]
  %s5 = inlined_call_operand.hbm [shape: bf16[8,8], index: 5, kind: input, shape index: {}]
  %s6 = inlined_call_operand.hbm [shape: bf16[4,8,32], index: 6, kind: input, shape index: {}]
  %s7 = inlined_call_operand.hbm [shape: f32[1,32], index: 7, kind: input, shape index: {}]
  %s8 = inlined_call_operand.hbm [shape: f32[2,8,32], index: 8, kind: output, shape index: {}]
  %s9 = sld [smem:[#allocation0]]
  $region113: #{tpu_custom_call.1} parent=0
    _
  %s11 = ssub.s32 1, %s9
  %s12 = scalar_select 0, %s11, %s9
  $region1: #{tpu_custom_call.1} parent=0
    #allocation6 [shape = 'u8[4096]{0}', space=vmem, size = 0x1000, scoped, tag = 'input window, operand 0']
    #allocation7 [shape = 's32[2]{0}', space=sflag, size = 0x8, scoped, tag = 'scoped memory for tpu_custom_call.1']
    #allocation8 [shape = 's32[2]{0}', space=sflag, size = 0x8, scoped, tag = 'scoped memory for tpu_custom_call.1']
    #allocation9 [shape = 'u8[4096]{0}', space=vmem, size = 0x1000, scoped, tag = 'input window, operand 1']
    #allocation10 [shape = 's32[2]{0}', space=sflag, size = 0x8, scoped, tag = 'scoped memory for tpu_custom_call.1']
    #allocation11 [shape = 'u8[4096]{0}', space=vmem, size = 0x1000, scoped, tag = 'input window, operand 2']
    #allocation12 [shape = 'u8[2048]{0}', space=vmem, size = 0x800, scoped, tag = 'input window, operand 3, single buffered']
    #allocation13 [shape = 's32[1]{0}', space=sflag, size = 0x4, scoped, tag = 'scoped memory for tpu_custom_call.1']
    #allocation14 [shape = 'u8[2048]{0}', space=vmem, size = 0x800, scoped, tag = 'input window, operand 4, single buffered']
    #allocation15 [shape = 'u8[2048]{0}', space=vmem, size = 0x800, scoped, tag = 'input window, operand 5, single buffered']
    #allocation16 [shape = 's32[1]{0}', space=sflag, size = 0x4, scoped, tag = 'scoped memory for tpu_custom_call.1']
    #allocation17 [shape = 'u8[4096]{0}', space=vmem, size = 0x1000, scoped, tag = 'input window, operand 6']
    #allocation18 [shape = 'u8[512]{0}', space=vmem, size = 0x400, scoped, tag = 'input window, operand 7, single buffered']
    #allocation19 [shape = 'u8[8192]{0}', space=vmem, size = 0x2000, scoped, tag = 'output window, operand 0']
    %13 = vsyncpa [#allocation7], 0
    %s14 = scalar_lea.sflag [#allocation7], 1
    %15 = vsyncpa %s14, 0
    %16 = vsyncpa [#allocation10], 0
    %s17 = scalar_lea.sflag [#allocation10], 1
    %18 = vsyncpa %s17, 0
    %19 = vsyncpa [#allocation13], 0
    %20 = vsyncpa [#allocation16], 0
    %21 = vsyncpa [#allocation8], 0
    %s22 = scalar_lea.sflag [#allocation8], 1
    %23 = vsyncpa %s22, 0
    loop: start=0, step=1, limit=10
    $region2: #{tpu_custom_call.1} parent=1 // loop_pre_header
      _
    $region3: #{tpu_custom_call.1} parent=1 // loop_header
      %s25 = sphi 0, %s29
      %p26 = scmp.ge.s32.totalorder %s25, 10
      %s32 = sphi 0, %s58
      %s33 = sphi 0, %s54
      %s34 = sphi 0, %s50
      %s35 = sphi 0, %s46
      %s36 = sphi 0, %s32
      %s37 = sphi 0, %s33
      %s38 = sphi 0, %s34
      %s39 = sphi 0, %s35
      %s40 = sphi 0, %s36
      %s41 = sphi 0, %s37
      %s42 = sphi 0, %s38
      %s43 = sphi 0, %s39
      %s65 = sphi 0, %s67
      %s68 = sphi 0, %s65
      %s69 = sphi 0, %s68
      %s85 = sphi 0, %s69
      %s95 = sphi 0, %s97
      %s98 = sphi 0, %s95
      %s99 = sphi 0, %s98
      %s115 = sphi 0, %s99
      %s125 = sphi 0, %s127
      %s128 = sphi 0, %s125
      %s129 = sphi 0, %s128
      %s145 = sphi 0, %s129
      %s149 = sphi 0, %s149
      %s151 = sphi 0, %s149
      %s152 = sphi 0, %s151
      %s166 = sphi 0, %s152
      %s170 = sphi 0, %s170
      %s172 = sphi 0, %s170
      %s173 = sphi 0, %s172
      %s187 = sphi 0, %s173
      %s191 = sphi 0, %s191
      %s193 = sphi 0, %s191
      %s194 = sphi 0, %s193
      %s208 = sphi 0, %s194
      %s214 = sphi 0, %s216
      %s217 = sphi 0, %s214
      %s218 = sphi 0, %s217
      %s234 = sphi 0, %s218
      %s238 = sphi 0, %s238
      %s240 = sphi 0, %s238
      %s241 = sphi 0, %s240
      %s255 = sphi 0, %s241
      %s263 = sphi 0, %s265
      %s266 = sphi 0, %s263
      %s267 = sphi 0, %s266
      %s283 = sphi 0, %s267
    $region4: #{tpu_custom_call.1} parent=1 // loop_header_branch
      %28 = sbr.rel (%p26) target = $region8
    $region5: #{tpu_custom_call.1} parent=1 // loop_body
      %s30 = ssub.s32 %s25, 1
      %s31 = ssub.s32 %s25, 2
      %s44 = sadd.s32 1, %s35
      %p45 = scmp.ge.s32.totalorder %s44, 1
      %s46 = scalar_select %p45, 0, %s44
      %s47 = sadd.s32 1, %s34
      %s48 = scalar_select %p45, %s47, %s34
      %p49 = scmp.ge.s32.totalorder %s48, 4
      %s50 = scalar_select %p49, 0, %s48
      %s51 = sadd.s32 1, %s33
      %s52 = scalar_select %p49, %s51, %s33
      %p53 = scmp.ge.s32.totalorder %s52, 1
      %s54 = scalar_select %p53, 0, %s52
      %s55 = sadd.s32 1, %s32
      %s56 = scalar_select %p53, %s55, %s32
      %p57 = scmp.ge.s32.totalorder %s56, 2
      %s58 = scalar_select %p57, 0, %s56
      %s59 = ssub.s32 %s32, %s58
      %s60 = ssub.s32 %s34, %s50
      %s61 = sor.u32 %s59, %s60
      %s62 = ssub.s32 %s33, %s54
      %s63 = sor.u32 %s61, %s62
      %p64 = scmp.eq.s32.totalorder %s63, 0
      %s66 = sadd.s32 %s65, 1
      %s67 = scalar_select %p64, %s65, %s66
      %p70 = pneg %p64
      %p71 = scmp.eq.s32.totalorder %s25, 7
      %p72 = por %p70, %p71
      %p73 = scmp.ne.s32.totalorder %s65, %s68
      %p74 = scmp.eq.s32.totalorder %s25, 0
      %p75 = por %p73, %p74
      %p76 = scmp.ne.s32.totalorder %s65, %s68
      %p77 = scmp.eq.s32.totalorder %s30, 7
      %p78 = por %p76, %p77
      %p79 = scmp.ne.s32.totalorder %s68, %s69
      %p80 = scmp.eq.s32.totalorder %s30, 0
      %p81 = por %p79, %p80
      %p82 = scmp.ne.s32.totalorder %s68, %s69
      %p83 = scmp.eq.s32.totalorder %s31, 7
      %p84 = por %p82, %p83
      %p86 = scmp.ne.s32.totalorder %s69, %s85
      %p87 = scmp.eq.s32.totalorder %s31, 0
      %p88 = por %p86, %p87
      %s89 = ssub.s32 %s32, %s58
      %s90 = ssub.s32 %s34, %s50
      %s91 = sor.u32 %s89, %s90
      %s92 = ssub.s32 %s35, %s46
      %s93 = sor.u32 %s91, %s92
      %p94 = scmp.eq.s32.totalorder %s93, 0
      %s96 = sadd.s32 %s95, 1
      %s97 = scalar_select %p94, %s95, %s96
      %p100 = pneg %p94
      %p101 = scmp.eq.s32.totalorder %s25, 7
      %p102 = por %p100, %p101
      %p103 = scmp.ne.s32.totalorder %s95, %s98
      %p104 = scmp.eq.s32.totalorder %s25, 0
      %p105 = por %p103, %p104
      %p106 = scmp.ne.s32.totalorder %s95, %s98
      %p107 = scmp.eq.s32.totalorder %s30, 7
      %p108 = por %p106, %p107
      %p109 = scmp.ne.s32.totalorder %s98, %s99
      %p110 = scmp.eq.s32.totalorder %s30, 0
      %p111 = por %p109, %p110
      %p112 = scmp.ne.s32.totalorder %s98, %s99
      %p113 = scmp.eq.s32.totalorder %s31, 7
      %p114 = por %p112, %p113
      %p116 = scmp.ne.s32.totalorder %s99, %s115
      %p117 = scmp.eq.s32.totalorder %s31, 0
      %p118 = por %p116, %p117
      %s119 = ssub.s32 %s32, %s58
      %s120 = ssub.s32 %s34, %s50
      %s121 = sor.u32 %s119, %s120
      %s122 = ssub.s32 %s35, %s46
      %s123 = sor.u32 %s121, %s122
      %p124 = scmp.eq.s32.totalorder %s123, 0
      %s126 = sadd.s32 %s125, 1
      %s127 = scalar_select %p124, %s125, %s126
      %p130 = pneg %p124
      %p131 = scmp.eq.s32.totalorder %s25, 7
      %p132 = por %p130, %p131
      %p133 = scmp.ne.s32.totalorder %s125, %s128
      %p134 = scmp.eq.s32.totalorder %s25, 0
      %p135 = por %p133, %p134
      %p136 = scmp.ne.s32.totalorder %s125, %s128
      %p137 = scmp.eq.s32.totalorder %s30, 7
      %p138 = por %p136, %p137
      %p139 = scmp.ne.s32.totalorder %s128, %s129
      %p140 = scmp.eq.s32.totalorder %s30, 0
      %p141 = por %p139, %p140
      %p142 = scmp.ne.s32.totalorder %s128, %s129
      %p143 = scmp.eq.s32.totalorder %s31, 7
      %p144 = por %p142, %p143
      %p146 = scmp.ne.s32.totalorder %s129, %s145
      %p147 = scmp.eq.s32.totalorder %s31, 0
      %p148 = por %p146, %p147
      %s150 = sadd.s32 %s149, 1
      %p153 = scmp.eq.s32.totalorder %s25, 7
      %p154 = scmp.ne.s32.totalorder %s149, %s151
      %p155 = scmp.eq.s32.totalorder %s25, 0
      %p156 = por %p154, %p155
      %p157 = scmp.ne.s32.totalorder %s149, %s151
      %p158 = scmp.eq.s32.totalorder %s30, 7
      %p159 = por %p157, %p158
      %p160 = scmp.ne.s32.totalorder %s151, %s152
      %p161 = scmp.eq.s32.totalorder %s30, 0
      %p162 = por %p160, %p161
      %p163 = scmp.ne.s32.totalorder %s151, %s152
      %p164 = scmp.eq.s32.totalorder %s31, 7
      %p165 = por %p163, %p164
      %p167 = scmp.ne.s32.totalorder %s152, %s166
      %p168 = scmp.eq.s32.totalorder %s31, 0
      %p169 = por %p167, %p168
      %s171 = sadd.s32 %s170, 1
      %p174 = scmp.eq.s32.totalorder %s25, 7
      %p175 = scmp.ne.s32.totalorder %s170, %s172
      %p176 = scmp.eq.s32.totalorder %s25, 0
      %p177 = por %p175, %p176
      %p178 = scmp.ne.s32.totalorder %s170, %s172
      %p179 = scmp.eq.s32.totalorder %s30, 7
      %p180 = por %p178, %p179
      %p181 = scmp.ne.s32.totalorder %s172, %s173
      %p182 = scmp.eq.s32.totalorder %s30, 0
      %p183 = por %p181, %p182
      %p184 = scmp.ne.s32.totalorder %s172, %s173
      %p185 = scmp.eq.s32.totalorder %s31, 7
      %p186 = por %p184, %p185
      %p188 = scmp.ne.s32.totalorder %s173, %s187
      %p189 = scmp.eq.s32.totalorder %s31, 0
      %p190 = por %p188, %p189
      %s192 = sadd.s32 %s191, 1
      %p195 = scmp.eq.s32.totalorder %s25, 7
      %p196 = scmp.ne.s32.totalorder %s191, %s193
      %p197 = scmp.eq.s32.totalorder %s25, 0
      %p198 = por %p196, %p197
      %p199 = scmp.ne.s32.totalorder %s191, %s193
      %p200 = scmp.eq.s32.totalorder %s30, 7
      %p201 = por %p199, %p200
      %p202 = scmp.ne.s32.totalorder %s193, %s194
      %p203 = scmp.eq.s32.totalorder %s30, 0
      %p204 = por %p202, %p203
      %p205 = scmp.ne.s32.totalorder %s193, %s194
      %p206 = scmp.eq.s32.totalorder %s31, 7
      %p207 = por %p205, %p206
      %p209 = scmp.ne.s32.totalorder %s194, %s208
      %p210 = scmp.eq.s32.totalorder %s31, 0
      %p211 = por %p209, %p210
      %s212 = ssub.s32 %s34, %s50
      %p213 = scmp.eq.s32.totalorder %s212, 0
      %s215 = sadd.s32 %s214, 1
      %s216 = scalar_select %p213, %s214, %s215
      %p219 = pneg %p213
      %p220 = scmp.eq.s32.totalorder %s25, 7
      %p221 = por %p219, %p220
      %p222 = scmp.ne.s32.totalorder %s214, %s217
      %p223 = scmp.eq.s32.totalorder %s25, 0
      %p224 = por %p222, %p223
      %p225 = scmp.ne.s32.totalorder %s214, %s217
      %p226 = scmp.eq.s32.totalorder %s30, 7
      %p227 = por %p225, %p226
      %p228 = scmp.ne.s32.totalorder %s217, %s218
      %p229 = scmp.eq.s32.totalorder %s30, 0
      %p230 = por %p228, %p229
      %p231 = scmp.ne.s32.totalorder %s217, %s218
      %p232 = scmp.eq.s32.totalorder %s31, 7
      %p233 = por %p231, %p232
      %p235 = scmp.ne.s32.totalorder %s218, %s234
      %p236 = scmp.eq.s32.totalorder %s31, 0
      %p237 = por %p235, %p236
      %s239 = sadd.s32 %s238, 1
      %p242 = scmp.eq.s32.totalorder %s25, 7
      %p243 = scmp.ne.s32.totalorder %s238, %s240
      %p244 = scmp.eq.s32.totalorder %s25, 0
      %p245 = por %p243, %p244
      %p246 = scmp.ne.s32.totalorder %s238, %s240
      %p247 = scmp.eq.s32.totalorder %s30, 7
      %p248 = por %p246, %p247
      %p249 = scmp.ne.s32.totalorder %s240, %s241
      %p250 = scmp.eq.s32.totalorder %s30, 0
      %p251 = por %p249, %p250
      %p252 = scmp.ne.s32.totalorder %s240, %s241
      %p253 = scmp.eq.s32.totalorder %s31, 7
      %p254 = por %p252, %p253
      %p256 = scmp.ne.s32.totalorder %s241, %s255
      %p257 = scmp.eq.s32.totalorder %s31, 0
      %p258 = por %p256, %p257
      %s259 = ssub.s32 %s32, %s58
      %s260 = ssub.s32 %s33, %s54
      %s261 = sor.u32 %s259, %s260
      %p262 = scmp.eq.s32.totalorder %s261, 0
      %s264 = sadd.s32 %s263, 1
      %s265 = scalar_select %p262, %s263, %s264
      %p268 = pneg %p262
      %p269 = scmp.eq.s32.totalorder %s25, 7
      %p270 = por %p268, %p269
      %p271 = scmp.ne.s32.totalorder %s263, %s266
      %p272 = scmp.eq.s32.totalorder %s25, 0
      %p273 = por %p271, %p272
      %p274 = scmp.ne.s32.totalorder %s263, %s266
      %p275 = scmp.eq.s32.totalorder %s30, 7
      %p276 = por %p274, %p275
      %p277 = scmp.ne.s32.totalorder %s266, %s267
      %p278 = scmp.eq.s32.totalorder %s30, 0
      %p279 = por %p277, %p278
      %p280 = scmp.ne.s32.totalorder %s266, %s267
      %p281 = scmp.eq.s32.totalorder %s31, 7
      %p282 = por %p280, %p281
      %p284 = scmp.ne.s32.totalorder %s267, %s283
      %p285 = scmp.eq.s32.totalorder %s31, 0
      %p286 = por %p284, %p285
      %p287 = scmp.le.s32.totalorder 1, %s25
      %p288 = scmp.lt.s32.totalorder %s25, 9
      %p289 = pnand %p287, %p288
      %p290 = pneg %p289
      // Predicated region
      $region9: #{tpu_custom_call.1} parent=5 // pred_check
        _
      $region10: #{tpu_custom_call.1} parent=5 // pred_check_branch
        %292 = sbr.rel (%p289) target = $region12
      $region11: #{tpu_custom_call.1} parent=5 // pred_region
        %s293 = ssub.s32 %s25, 1
        // Predicated region
        $region13: #{tpu_custom_call.1} parent=11 // pred_check
          %p294 = pneg %p162
        $region14: #{tpu_custom_call.1} parent=11 // pred_check_branch
          %296 = sbr.rel (%p294) target = $region16
        $region15: #{tpu_custom_call.1} parent=11 // pred_region
          %s298 = ssub.s32 64, 64
          %299 = vsyncadd [#allocation13], %s298
          %s301 = sshll.u32 [#allocation12], 4
          %s302 = int_to_ptr.vmem [resolvable:$true] %s301
          %304 = dma.hbm_to_vmem [thread:$0]  %s3, 64, %s302, [#allocation13]
        $region16: #{tpu_custom_call.1} parent=11 // pred_fallthru
          _
        // Predicated region
        $region17: #{tpu_custom_call.1} parent=11 // pred_check
          %p305 = pneg %p183
        $region18: #{tpu_custom_call.1} parent=11 // pred_check_branch
          %307 = sbr.rel (%p305) target = $region20
        $region19: #{tpu_custom_call.1} parent=11 // pred_region
          %s309 = ssub.s32 64, 64
          %310 = vsyncadd [#allocation13], %s309
          %s312 = sshll.u32 [#allocation14], 4
          %s313 = int_to_ptr.vmem [resolvable:$true] %s312
          %315 = dma.hbm_to_vmem [thread:$0]  %s4, 64, %s313, [#allocation13]
        $region20: #{tpu_custom_call.1} parent=11 // pred_fallthru
          _
        // Predicated region
        $region21: #{tpu_custom_call.1} parent=11 // pred_check
          %p316 = pneg %p204
        $region22: #{tpu_custom_call.1} parent=11 // pred_check_branch
          %318 = sbr.rel (%p316) target = $region24
        $region23: #{tpu_custom_call.1} parent=11 // pred_region
          %s320 = ssub.s32 64, 64
          %321 = vsyncadd [#allocation16], %s320
          %s323 = sshll.u32 [#allocation15], 4
          %s324 = int_to_ptr.vmem [resolvable:$true] %s323
          %326 = dma.hbm_to_vmem [thread:$0]  %s5, 64, %s324, [#allocation16]
        $region24: #{tpu_custom_call.1} parent=11 // pred_fallthru
          _
        // Predicated region
        $region25: #{tpu_custom_call.1} parent=11 // pred_check
          %p327 = pneg %p251
        $region26: #{tpu_custom_call.1} parent=11 // pred_check_branch
          %329 = sbr.rel (%p327) target = $region28
        $region27: #{tpu_custom_call.1} parent=11 // pred_region
          %s331 = ssub.s32 16, 16
          %332 = vsyncadd [#allocation10], %s331
          %s334 = sshll.u32 [#allocation18], 4
          %s335 = int_to_ptr.vmem [resolvable:$true] %s334
          %337 = dma.hbm_to_vmem [thread:$0]  %s7, 16, %s335, [#allocation10]
        $region28: #{tpu_custom_call.1} parent=11 // pred_fallthru
          _
      $region12: #{tpu_custom_call.1} parent=5 // pred_fallthru
        _
      %p338 = scmp.lt.s32.totalorder %s25, 8
      // Predicated region
      $region29: #{tpu_custom_call.1} parent=5 // pred_check
        %p339 = pneg %p338
      $region30: #{tpu_custom_call.1} parent=5 // pred_check_branch
        %341 = sbr.rel (%p339) target = $region32
      $region31: #{tpu_custom_call.1} parent=5 // pred_region
        // Predicated region
        $region33: #{tpu_custom_call.1} parent=31 // pred_check
          %p342 = pneg %p75
        $region34: #{tpu_custom_call.1} parent=31 // pred_check_branch
          %344 = sbr.rel (%p342) target = $region36
        $region35: #{tpu_custom_call.1} parent=31 // pred_region
          %s345 = sand.u32 %s25, 1
          %s346 = scalar_lea.sflag [#allocation7], %s345
          %s347 = sand.u32 %s65, 1
          %s348 = smul.addr %s347, 4
          %s349 = scalar_lea.vmem [#allocation6], %s348
          %s351 = ssub.s32 64, 64
          %352 = vsyncadd %s346, %s351
          %s353 = sadd.s32 %s33, %s34
          %s354 = smul.addr %s32, 4
          %s355 = sadd.s32 %s353, %s354
          %s356 = smul.addr %s355, 64
          %s357 = scalar_lea.hbm %s0, %s356
          %s359 = sshll.u32 %s349, 4
          %s360 = int_to_ptr.vmem [resolvable:$true] %s359
          %362 = dma.hbm_to_vmem [thread:$0]  %s357, 64, %s360, %s346
        $region36: #{tpu_custom_call.1} parent=31 // pred_fallthru
          _
        // Predicated region
        $region37: #{tpu_custom_call.1} parent=31 // pred_check
          %p363 = pneg %p105
        $region38: #{tpu_custom_call.1} parent=31 // pred_check_branch
          %365 = sbr.rel (%p363) target = $region40
        $region39: #{tpu_custom_call.1} parent=31 // pred_region
          %s366 = sand.u32 %s25, 1
          %s367 = scalar_lea.sflag [#allocation10], %s366
          %s368 = sand.u32 %s95, 1
          %s369 = smul.addr %s368, 4
          %s370 = scalar_lea.vmem [#allocation9], %s369
          %s372 = ssub.s32 64, 64
          %373 = vsyncadd %s367, %s372
          %s374 = sadd.s32 %s35, %s34
          %s375 = smul.addr %s32, 4
          %s376 = sadd.s32 %s374, %s375
          %s377 = smul.addr %s376, 64
          %s378 = scalar_lea.hbm %s1, %s377
          %s380 = sshll.u32 %s370, 4
          %s381 = int_to_ptr.vmem [resolvable:$true] %s380
          %383 = dma.hbm_to_vmem [thread:$0]  %s378, 64, %s381, %s367
        $region40: #{tpu_custom_call.1} parent=31 // pred_fallthru
          _
        // Predicated region
        $region41: #{tpu_custom_call.1} parent=31 // pred_check
          %p384 = pneg %p135
        $region42: #{tpu_custom_call.1} parent=31 // pred_check_branch
          %386 = sbr.rel (%p384) target = $region44
        $region43: #{tpu_custom_call.1} parent=31 // pred_region
          %s387 = sand.u32 %s25, 1
          %s388 = scalar_lea.sflag [#allocation10], %s387
          %s389 = sand.u32 %s125, 1
          %s390 = smul.addr %s389, 4
          %s391 = scalar_lea.vmem [#allocation11], %s390
          %s393 = ssub.s32 64, 64
          %394 = vsyncadd %s388, %s393
          %s395 = sadd.s32 %s35, %s34
          %s396 = smul.addr %s32, 4
          %s397 = sadd.s32 %s395, %s396
          %s398 = smul.addr %s397, 64
          %s399 = scalar_lea.hbm %s2, %s398
          %s401 = sshll.u32 %s391, 4
          %s402 = int_to_ptr.vmem [resolvable:$true] %s401
          %404 = dma.hbm_to_vmem [thread:$0]  %s399, 64, %s402, %s388
        $region44: #{tpu_custom_call.1} parent=31 // pred_fallthru
          _
        // Predicated region
        $region45: #{tpu_custom_call.1} parent=31 // pred_check
          %p405 = pneg %p224
        $region46: #{tpu_custom_call.1} parent=31 // pred_check_branch
          %407 = sbr.rel (%p405) target = $region48
        $region47: #{tpu_custom_call.1} parent=31 // pred_region
          %s408 = sand.u32 %s25, 1
          %s409 = scalar_lea.sflag [#allocation7], %s408
          %s410 = sand.u32 %s214, 1
          %s411 = smul.addr %s410, 4
          %s412 = scalar_lea.vmem [#allocation17], %s411
          %s414 = ssub.s32 64, 64
          %415 = vsyncadd %s409, %s414
          %s416 = smul.addr %s34, 64
          %s417 = scalar_lea.hbm %s6, %s416
          %s419 = sshll.u32 %s412, 4
          %s420 = int_to_ptr.vmem [resolvable:$true] %s419
          %422 = dma.hbm_to_vmem [thread:$0]  %s417, 64, %s420, %s409
        $region48: #{tpu_custom_call.1} parent=31 // pred_fallthru
          _
      $region32: #{tpu_custom_call.1} parent=5 // pred_fallthru
        _
      %p423 = scmp.le.s32.totalorder 1, %s25
      %p424 = scmp.lt.s32.totalorder %s25, 9
      %p425 = pnand %p423, %p424
      %p426 = pneg %p425
      // Predicated region
      $region49: #{tpu_custom_call.1} parent=5 // pred_check
        _
      $region50: #{tpu_custom_call.1} parent=5 // pred_check_branch
        %428 = sbr.rel (%p425) target = $region52
      $region51: #{tpu_custom_call.1} parent=5 // pred_region
        %s429 = ssub.s32 %s25, 1
        %s430 = sand.u32 %s30, 1
        %s431 = scalar_lea.sflag [#allocation7], %s430
        %s432 = sand.u32 %s68, 1
        %s433 = smul.addr %s432, 4
        %s434 = scalar_lea.vmem [#allocation6], %s433
        // Predicated region
        $region53: #{tpu_custom_call.1} parent=51 // pred_check
          %p435 = pneg %p81
        $region54: #{tpu_custom_call.1} parent=51 // pred_check_branch
          %437 = sbr.rel (%p435) target = $region56
        $region55: #{tpu_custom_call.1} parent=51 // pred_region
          %438 = dma.done %s431, 64
        $region56: #{tpu_custom_call.1} parent=51 // pred_fallthru
          _
        %s439 = sand.u32 %s30, 1
        %s440 = scalar_lea.sflag [#allocation10], %s439
        %s441 = sand.u32 %s98, 1
        %s442 = smul.addr %s441, 4
        %s443 = scalar_lea.vmem [#allocation9], %s442
        // Predicated region
        $region57: #{tpu_custom_call.1} parent=51 // pred_check
          %p444 = pneg %p111
        $region58: #{tpu_custom_call.1} parent=51 // pred_check_branch
          %446 = sbr.rel (%p444) target = $region60
        $region59: #{tpu_custom_call.1} parent=51 // pred_region
          %447 = dma.done %s440, 64
        $region60: #{tpu_custom_call.1} parent=51 // pred_fallthru
          _
        %s448 = sand.u32 %s30, 1
        %s449 = scalar_lea.sflag [#allocation10], %s448
        %s450 = sand.u32 %s128, 1
        %s451 = smul.addr %s450, 4
        %s452 = scalar_lea.vmem [#allocation11], %s451
        // Predicated region
        $region61: #{tpu_custom_call.1} parent=51 // pred_check
          %p453 = pneg %p141
        $region62: #{tpu_custom_call.1} parent=51 // pred_check_branch
          %455 = sbr.rel (%p453) target = $region64
        $region63: #{tpu_custom_call.1} parent=51 // pred_region
          %456 = dma.done %s449, 64
        $region64: #{tpu_custom_call.1} parent=51 // pred_fallthru
          _
        // Predicated region
        $region65: #{tpu_custom_call.1} parent=51 // pred_check
          %p457 = pneg %p162
        $region66: #{tpu_custom_call.1} parent=51 // pred_check_branch
          %459 = sbr.rel (%p457) target = $region68
        $region67: #{tpu_custom_call.1} parent=51 // pred_region
          %460 = dma.done [#allocation13], 64
        $region68: #{tpu_custom_call.1} parent=51 // pred_fallthru
          _
        // Predicated region
        $region69: #{tpu_custom_call.1} parent=51 // pred_check
          %p461 = pneg %p183
        $region70: #{tpu_custom_call.1} parent=51 // pred_check_branch
          %463 = sbr.rel (%p461) target = $region72
        $region71: #{tpu_custom_call.1} parent=51 // pred_region
          %464 = dma.done [#allocation13], 64
        $region72: #{tpu_custom_call.1} parent=51 // pred_fallthru
          _
        // Predicated region
        $region73: #{tpu_custom_call.1} parent=51 // pred_check
          %p465 = pneg %p204
        $region74: #{tpu_custom_call.1} parent=51 // pred_check_branch
          %467 = sbr.rel (%p465) target = $region76
        $region75: #{tpu_custom_call.1} parent=51 // pred_region
          %468 = dma.done [#allocation16], 64
        $region76: #{tpu_custom_call.1} parent=51 // pred_fallthru
          _
        %s469 = sand.u32 %s30, 1
        %s470 = scalar_lea.sflag [#allocation7], %s469
        %s471 = sand.u32 %s217, 1
        %s472 = smul.addr %s471, 4
        %s473 = scalar_lea.vmem [#allocation17], %s472
        // Predicated region
        $region77: #{tpu_custom_call.1} parent=51 // pred_check
          %p474 = pneg %p230
        $region78: #{tpu_custom_call.1} parent=51 // pred_check_branch
          %476 = sbr.rel (%p474) target = $region80
        $region79: #{tpu_custom_call.1} parent=51 // pred_region
          %477 = dma.done %s470, 64
        $region80: #{tpu_custom_call.1} parent=51 // pred_fallthru
          _
        // Predicated region
        $region81: #{tpu_custom_call.1} parent=51 // pred_check
          %p478 = pneg %p251
        $region82: #{tpu_custom_call.1} parent=51 // pred_check_branch
          %480 = sbr.rel (%p478) target = $region84
        $region83: #{tpu_custom_call.1} parent=51 // pred_region
          %481 = dma.done [#allocation10], 16
        $region84: #{tpu_custom_call.1} parent=51 // pred_fallthru
          _
        %s482 = sand.u32 %s30, 1
        %s483 = scalar_lea.sflag [#allocation7], %s482
        %s484 = sand.u32 %s68, 1
        %s485 = smul.addr %s484, 4
        %s486 = scalar_lea.vmem [#allocation6], %s485
        %p487 = pneg %p81
        %p488 = pneg %p78
        %s489 = sand.u32 %s30, 1
        %s490 = scalar_lea.sflag [#allocation10], %s489
        %s491 = sand.u32 %s98, 1
        %s492 = smul.addr %s491, 4
        %s493 = scalar_lea.vmem [#allocation9], %s492
        %p494 = pneg %p111
        %p495 = pneg %p108
        %s496 = sand.u32 %s30, 1
        %s497 = scalar_lea.sflag [#allocation10], %s496
        %s498 = sand.u32 %s128, 1
        %s499 = smul.addr %s498, 4
        %s500 = scalar_lea.vmem [#allocation11], %s499
        %p501 = pneg %p141
        %p502 = pneg %p138
        %p503 = pneg %p162
        %p504 = pneg %p159
        %p505 = pneg %p183
        %p506 = pneg %p180
        %p507 = pneg %p204
        %p508 = pneg %p201
        %s509 = sand.u32 %s30, 1
        %s510 = scalar_lea.sflag [#allocation7], %s509
        %s511 = sand.u32 %s217, 1
        %s512 = smul.addr %s511, 4
        %s513 = scalar_lea.vmem [#allocation17], %s512
        %p514 = pneg %p230
        %p515 = pneg %p227
        %p516 = pneg %p251
        %p517 = pneg %p248
        %p518 = pneg %p279
        %p519 = pneg %p276
        %s520 = sand.u32 %s266, 1
        %s521 = scalar_lea.sflag [#allocation8], %s520
        %s522 = sand.u32 %s266, 1
        %s523 = smul.addr %s522, 8
        %s524 = scalar_lea.vmem [#allocation19], %s523
        %p526 = scmp.eq.s32.totalorder %s38, 0
        %p527 = scmp.eq.s32.totalorder %s39, 0
        %p528 = pnand %p526, %p527
        %p529 = pneg %p528
        // Predicated region
        $region85: #{tpu_custom_call.1} parent=51 // pred_check
          _
        $region86: #{tpu_custom_call.1} parent=51 // pred_check_branch
          %531 = sbr.rel (%p528) target = $region88
        $region87: #{tpu_custom_call.1} parent=51 // pred_region
          %v532 = vld [vmem:[#allocation18] sm:$0x1]
          %v534 = vlaneseq
          %v535 = vshrl.u32 %v534, 7
          %v536 = vsub.s32 0, %v535
          %v537 = vrot.slane %v532, %v536
          %vm539 = vcmask 261120
          %540 = vst.msk [vmem:[#allocation5] sm:$0xff] %vm539, %v537
        $region88: #{tpu_custom_call.1} parent=51 // pred_fallthru
          _
        // Predicated region
        $region89: #{tpu_custom_call.1} parent=51 // pred_check
          %p541 = pneg %p527
        $region90: #{tpu_custom_call.1} parent=51 // pred_check_branch
          %543 = sbr.rel (%p541) target = $region92
        $region91: #{tpu_custom_call.1} parent=51 // pred_region
          %vm544 = vcmask 7168
          %545 = vst.msk [vmem:[#allocation2] sm:$0xff] %vm544, -inf
          %546 = vst.msk [vmem:[#allocation3] sm:$0xff] %vm544, 0.0
          %vm547 = vcmask 64512
          %548 = vst.msk [vmem:[#allocation4] sm:$0xff] %vm547, 0.0
        $region92: #{tpu_custom_call.1} parent=51 // pred_fallthru
          _
        %v549 = vld [vmem:[%s434] sm:$0xf]
        %v550 = vld [vmem:[%s443] sm:$0xf]
        %v551 = vld [vmem:[%s452] sm:$0xf]
        %v552 = vld [vmem:[#allocation12] sm:$0xf]
        %vm553 = vcmask 64512
        %v555 = vsel %vm553, %v549, 0
        %vm557 = vcmask 1043456
        %v559 = vsel %vm557, %v552, 0
        %561 = vmatprep.subr.bf16.mxu0 0
        %562 = vmatpush1.bf16.msra.mxu0 %v559
        %563 = vmatprep.subr.bf16.mxu0 0
        %564 = vmatpush1.bf16.msra.mxu0 0
        %565 = vmatprep.subr.bf16.mxu0 0
        %566 = vmatpush1.bf16.msra.mxu0 0
        %567 = vmatprep.subr.bf16.mxu0 0
        %568 = vmatpush1.bf16.msra.mxu0 0
        %569 = vmatprep.subr.bf16.mxu0 0
        %570 = vmatpush1.bf16.msra.mxu0 0
        %571 = vmatprep.subr.bf16.mxu0 0
        %572 = vmatpush1.bf16.msra.mxu0 0
        %573 = vmatprep.subr.bf16.mxu0 0
        %574 = vmatpush1.bf16.msra.mxu0 0
        %575 = vmatprep.subr.bf16.mxu0 0
        %576 = vmatpush1.bf16.msra.mxu0 0
        %577 = vmatprep.subr.bf16.mxu0 0
        %578 = vmatpush1.bf16.msra.mxu0 0
        %579 = vmatprep.subr.bf16.mxu0 0
        %580 = vmatpush1.bf16.msra.mxu0 0
        %581 = vmatprep.subr.bf16.mxu0 0
        %582 = vmatpush1.bf16.msra.mxu0 0
        %583 = vmatprep.subr.bf16.mxu0 0
        %584 = vmatpush1.bf16.msra.mxu0 0
        %585 = vmatprep.subr.bf16.mxu0 0
        %586 = vmatpush1.bf16.msra.mxu0 0
        %587 = vmatprep.subr.bf16.mxu0 0
        %588 = vmatpush1.bf16.msra.mxu0 0
        %589 = vmatprep.subr.bf16.mxu0 0
        %590 = vmatpush1.bf16.msra.mxu0 0
        %591 = vmatprep.subr.bf16.mxu0 0
        %592 = vmatpush1.bf16.msra.mxu0 0
        %593 = vmatprep.mubr.bf16.mxu0 0
        %594 = vmatmul.mubr.bf16.gmra.mrb[0].mxu0 %v555
        %v595 = vpop.f32.mrb[0].mxu0
        %v596 = vadd.f32 0.0, %v595
        %v597 = vpop.f32.mrb[0].mxu0
        %v598 = vpop.f32.mrb[0].mxu0
        %v599 = vpop.f32.mrb[0].mxu0
        %600 = vdwg.mxu0
        %v601 = vmul.f32 %v596, 0.17677669
        %v602 = vld [vmem:[#allocation14] sm:$0xf]
        %v604 = vsel %vm553, %v550, 0
        %v607 = vsel %vm557, %v602, 0
        %609 = vmatprep.subr.bf16.mxu0 0
        %610 = vmatpush1.bf16.msra.mxu0 %v607
        %611 = vmatprep.subr.bf16.mxu0 0
        %612 = vmatpush1.bf16.msra.mxu0 0
        %613 = vmatprep.subr.bf16.mxu0 0
        %614 = vmatpush1.bf16.msra.mxu0 0
        %615 = vmatprep.subr.bf16.mxu0 0
        %616 = vmatpush1.bf16.msra.mxu0 0
        %617 = vmatprep.subr.bf16.mxu0 0
        %618 = vmatpush1.bf16.msra.mxu0 0
        %619 = vmatprep.subr.bf16.mxu0 0
        %620 = vmatpush1.bf16.msra.mxu0 0
        %621 = vmatprep.subr.bf16.mxu0 0
        %622 = vmatpush1.bf16.msra.mxu0 0
        %623 = vmatprep.subr.bf16.mxu0 0
        %624 = vmatpush1.bf16.msra.mxu0 0
        %625 = vmatprep.subr.bf16.mxu0 0
        %626 = vmatpush1.bf16.msra.mxu0 0
        %627 = vmatprep.subr.bf16.mxu0 0
        %628 = vmatpush1.bf16.msra.mxu0 0
        %629 = vmatprep.subr.bf16.mxu0 0
        %630 = vmatpush1.bf16.msra.mxu0 0
        %631 = vmatprep.subr.bf16.mxu0 0
        %632 = vmatpush1.bf16.msra.mxu0 0
        %633 = vmatprep.subr.bf16.mxu0 0
        %634 = vmatpush1.bf16.msra.mxu0 0
        %635 = vmatprep.subr.bf16.mxu0 0
        %636 = vmatpush1.bf16.msra.mxu0 0
        %637 = vmatprep.subr.bf16.mxu0 0
        %638 = vmatpush1.bf16.msra.mxu0 0
        %639 = vmatprep.subr.bf16.mxu0 0
        %640 = vmatpush1.bf16.msra.mxu0 0
        %641 = vmatprep.mubr.bf16.mxu0 0
        %642 = vmatmul.mubr.bf16.gmra.mrb[0].mxu0 %v604
        %v643 = vpop.f32.mrb[0].mxu0
        %v644 = vadd.f32 0.0, %v643
        %v645 = vpop.f32.mrb[0].mxu0
        %v646 = vpop.f32.mrb[0].mxu0
        %v647 = vpop.f32.mrb[0].mxu0
        %648 = vdwg.mxu0
        %v649 = vld [vmem:[#allocation15] sm:$0xf]
        %v651 = vsel %vm553, %v551, 0
        %v654 = vsel %vm557, %v649, 0
        %656 = vmatprep.subr.bf16.mxu0 0
        %657 = vmatpush1.bf16.msra.mxu0 %v654
        %658 = vmatprep.subr.bf16.mxu0 0
        %659 = vmatpush1.bf16.msra.mxu0 0
        %660 = vmatprep.subr.bf16.mxu0 0
        %661 = vmatpush1.bf16.msra.mxu0 0
        %662 = vmatprep.subr.bf16.mxu0 0
        %663 = vmatpush1.bf16.msra.mxu0 0
        %664 = vmatprep.subr.bf16.mxu0 0
        %665 = vmatpush1.bf16.msra.mxu0 0
        %666 = vmatprep.subr.bf16.mxu0 0
        %667 = vmatpush1.bf16.msra.mxu0 0
        %668 = vmatprep.subr.bf16.mxu0 0
        %669 = vmatpush1.bf16.msra.mxu0 0
        %670 = vmatprep.subr.bf16.mxu0 0
        %671 = vmatpush1.bf16.msra.mxu0 0
        %672 = vmatprep.subr.bf16.mxu0 0
        %673 = vmatpush1.bf16.msra.mxu0 0
        %674 = vmatprep.subr.bf16.mxu0 0
        %675 = vmatpush1.bf16.msra.mxu0 0
        %676 = vmatprep.subr.bf16.mxu0 0
        %677 = vmatpush1.bf16.msra.mxu0 0
        %678 = vmatprep.subr.bf16.mxu0 0
        %679 = vmatpush1.bf16.msra.mxu0 0
        %680 = vmatprep.subr.bf16.mxu0 0
        %681 = vmatpush1.bf16.msra.mxu0 0
        %682 = vmatprep.subr.bf16.mxu0 0
        %683 = vmatpush1.bf16.msra.mxu0 0
        %684 = vmatprep.subr.bf16.mxu0 0
        %685 = vmatpush1.bf16.msra.mxu0 0
        %686 = vmatprep.subr.bf16.mxu0 0
        %687 = vmatpush1.bf16.msra.mxu0 0
        %688 = vmatprep.mubr.bf16.mxu0 0
        %689 = vmatmul.mubr.bf16.gmra.mrb[0].mxu0 %v651
        %v690 = vpop.f32.mrb[0].mxu0
        %v691 = vadd.f32 0.0, %v690
        %v692 = vpop.f32.mrb[0].mxu0
        %v693 = vpop.f32.mrb[0].mxu0
        %v694 = vpop.f32.mrb[0].mxu0
        %695 = vdwg.mxu0
        %v696 = vpack.c.bf16 %v601, %v601
        %v697 = vpack.c.bf16 %v644, %v644
        %v699 = vsel %vm553, %v696, 0
        %v702 = vsel %vm553, %v697, 0
        %704 = vmatprep.subr.bf16.mxu0 0
        %705 = vmatpush1.bf16.xpose.msra.mxu0 %v702
        %706 = vmatprep.subr.bf16.mxu0 0
        %707 = vmatpush1.bf16.xpose.msra.mxu0 0
        %708 = vmatprep.subr.bf16.mxu0 0
        %709 = vmatpush1.bf16.xpose.msra.mxu0 0
        %710 = vmatprep.subr.bf16.mxu0 0
        %711 = vmatpush1.bf16.xpose.msra.mxu0 0
        %712 = vmatprep.subr.bf16.mxu0 0
        %713 = vmatpush1.bf16.xpose.msra.mxu0 0
        %714 = vmatprep.subr.bf16.mxu0 0
        %715 = vmatpush1.bf16.xpose.msra.mxu0 0
        %716 = vmatprep.subr.bf16.mxu0 0
        %717 = vmatpush1.bf16.xpose.msra.mxu0 0
        %718 = vmatprep.subr.bf16.mxu0 0
        %719 = vmatpush1.bf16.xpose.msra.mxu0 0
        %720 = vmatprep.subr.bf16.mxu0 0
        %721 = vmatpush1.bf16.xpose.msra.mxu0 0
        %722 = vmatprep.subr.bf16.mxu0 0
        %723 = vmatpush1.bf16.xpose.msra.mxu0 0
        %724 = vmatprep.subr.bf16.mxu0 0
        %725 = vmatpush1.bf16.xpose.msra.mxu0 0
        %726 = vmatprep.subr.bf16.mxu0 0
        %727 = vmatpush1.bf16.xpose.msra.mxu0 0
        %728 = vmatprep.subr.bf16.mxu0 0
        %729 = vmatpush1.bf16.xpose.msra.mxu0 0
        %730 = vmatprep.subr.bf16.mxu0 0
        %731 = vmatpush1.bf16.xpose.msra.mxu0 0
        %732 = vmatprep.subr.bf16.mxu0 0
        %733 = vmatpush1.bf16.xpose.msra.mxu0 0
        %734 = vmatprep.subr.bf16.mxu0 0
        %735 = vmatpush1.bf16.xpose.msra.mxu0 0
        %736 = vmatprep.mubr.bf16.mxu0 0
        %737 = vmatmul.mubr.bf16.gmra.mrb[0].mxu0 %v699
        %v738 = vpop.f32.mrb[0].mxu0
        %v739 = vadd.f32 0.0, %v738
        %v740 = vpop.f32.mrb[0].mxu0
        %v741 = vpop.f32.mrb[0].mxu0
        %v742 = vpop.f32.mrb[0].mxu0
        %743 = vdwg.mxu0
        %v744 = vld [vmem:[#allocation2] sm:$0xff]
        %v745 = vsel %vm553, %v739, -inf
        %746 = vmax.xlane.f32.xlu0 %v745
        %v747 = vpop.xlane.xlu0 %746
        %v748 = vmax.f32 %v744, %v747
        %v749 = vsub.f32 %v744, %v748
        %v750 = vmul.f32 %v749, 1.442695
        %v751 = vpow.pop %v750
        %753 = vset.pattern.permute.xlu0 0
        %754 = vperm.xlu0 %753, %v748
        %v755 = vpop.permute.xlu0 %754
        %v757 = vsub.f32 %v739, %v755
        %v758 = vmul.f32 %v757, 1.442695
        %v759 = vpow.pop %v758
        %v760 = vld [vmem:[#allocation3] sm:$0xff]
        %v761 = vmul.f32 %v751, %v760
        %v762 = vsel %vm553, %v759, 0.0
        %763 = vadd.xlane.f32.xlu0 %v762
        %v764 = vpop.xlane.xlu0 %763
        %v765 = vadd.f32 %v761, %v764
        %vm766 = vcmask 7168
        %767 = vst.msk [vmem:[#allocation3] sm:$0xff] %vm766, %v765
        %v768 = vld [vmem:[#allocation4] sm:$0xff]
        %770 = vset.pattern.permute.xlu0 0
        %771 = vperm.xlu0 %770, %v751
        %v772 = vpop.permute.xlu0 %771
        %v774 = vmul.f32 %v772, %v768
        %v775 = vpack.c.bf16 %v759, %v759
        %v776 = vpack.c.bf16 %v691, %v691
        %v778 = vsel %vm553, %v775, 0
        %v781 = vsel %vm557, %v776, 0
        %783 = vmatprep.subr.bf16.mxu0 0
        %784 = vmatpush1.bf16.msra.mxu0 %v781
        %785 = vmatprep.subr.bf16.mxu0 0
        %786 = vmatpush1.bf16.msra.mxu0 0
        %787 = vmatprep.subr.bf16.mxu0 0
        %788 = vmatpush1.bf16.msra.mxu0 0
        %789 = vmatprep.subr.bf16.mxu0 0
        %790 = vmatpush1.bf16.msra.mxu0 0
        %791 = vmatprep.subr.bf16.mxu0 0
        %792 = vmatpush1.bf16.msra.mxu0 0
        %793 = vmatprep.subr.bf16.mxu0 0
        %794 = vmatpush1.bf16.msra.mxu0 0
        %795 = vmatprep.subr.bf16.mxu0 0
        %796 = vmatpush1.bf16.msra.mxu0 0
        %797 = vmatprep.subr.bf16.mxu0 0
        %798 = vmatpush1.bf16.msra.mxu0 0
        %799 = vmatprep.subr.bf16.mxu0 0
        %800 = vmatpush1.bf16.msra.mxu0 0
        %801 = vmatprep.subr.bf16.mxu0 0
        %802 = vmatpush1.bf16.msra.mxu0 0
        %803 = vmatprep.subr.bf16.mxu0 0
        %804 = vmatpush1.bf16.msra.mxu0 0
        %805 = vmatprep.subr.bf16.mxu0 0
        %806 = vmatpush1.bf16.msra.mxu0 0
        %807 = vmatprep.subr.bf16.mxu0 0
        %808 = vmatpush1.bf16.msra.mxu0 0
        %809 = vmatprep.subr.bf16.mxu0 0
        %810 = vmatpush1.bf16.msra.mxu0 0
        %811 = vmatprep.subr.bf16.mxu0 0
        %812 = vmatpush1.bf16.msra.mxu0 0
        %813 = vmatprep.subr.bf16.mxu0 0
        %814 = vmatpush1.bf16.msra.mxu0 0
        %815 = vmatprep.mubr.bf16.mxu0 0
        %816 = vmatmul.mubr.bf16.gmra.mrb[0].mxu0 %v778
        %v817 = vpop.f32.mrb[0].mxu0
        %v818 = vadd.f32 0.0, %v817
        %v819 = vpop.f32.mrb[0].mxu0
        %v820 = vpop.f32.mrb[0].mxu0
        %v821 = vpop.f32.mrb[0].mxu0
        %822 = vdwg.mxu0
        %v823 = vadd.f32 %v774, %v818
        %824 = vst.msk [vmem:[#allocation4] sm:$0xff] %vm553, %v823
        %825 = vst.msk [vmem:[#allocation2] sm:$0xff] %vm766, %v748
        // Predicated region
        $region93: #{tpu_custom_call.1} parent=51 // pred_check
          %p826 = pneg %p527
        $region94: #{tpu_custom_call.1} parent=51 // pred_check_branch
          %828 = sbr.rel (%p826) target = $region96
        $region95: #{tpu_custom_call.1} parent=51 // pred_region
          %v829 = vld [vmem:[#allocation4] sm:$0xff]
          %v830 = vld [vmem:[#allocation3] sm:$0xff]
          %v831 = vrcp.pop %v830
          %833 = vset.pattern.permute.xlu0 0
          %834 = vperm.xlu0 %833, %v831
          %v835 = vpop.permute.xlu0 %834
          %v837 = vmul.f32 %v829, %v835
          %v838 = vld [vmem:[#allocation5] sm:$0xff]
          %v839 = vpack.c.bf16 %v837, %v837
          %v840 = vld [vmem:[%s473] sm:$0xf]
          %v842 = vsel %vm553, %v839, 0
          %v845 = vsel %vm557, %v840, 0
          %847 = vmatprep.subr.bf16.mxu0 0
          %848 = vmatpush1.bf16.msra.mxu0 %v845
          %849 = vmatprep.subr.bf16.mxu0 0
          %850 = vmatpush1.bf16.msra.mxu0 0
          %851 = vmatprep.subr.bf16.mxu0 0
          %852 = vmatpush1.bf16.msra.mxu0 0
          %853 = vmatprep.subr.bf16.mxu0 0
          %854 = vmatpush1.bf16.msra.mxu0 0
          %855 = vmatprep.subr.bf16.mxu0 0
          %856 = vmatpush1.bf16.msra.mxu0 0
          %857 = vmatprep.subr.bf16.mxu0 0
          %858 = vmatpush1.bf16.msra.mxu0 0
          %859 = vmatprep.subr.bf16.mxu0 0
          %860 = vmatpush1.bf16.msra.mxu0 0
          %861 = vmatprep.subr.bf16.mxu0 0
          %862 = vmatpush1.bf16.msra.mxu0 0
          %863 = vmatprep.subr.bf16.mxu0 0
          %864 = vmatpush1.bf16.msra.mxu0 0
          %865 = vmatprep.subr.bf16.mxu0 0
          %866 = vmatpush1.bf16.msra.mxu0 0
          %867 = vmatprep.subr.bf16.mxu0 0
          %868 = vmatpush1.bf16.msra.mxu0 0
          %869 = vmatprep.subr.bf16.mxu0 0
          %870 = vmatpush1.bf16.msra.mxu0 0
          %871 = vmatprep.subr.bf16.mxu0 0
          %872 = vmatpush1.bf16.msra.mxu0 0
          %873 = vmatprep.subr.bf16.mxu0 0
          %874 = vmatpush1.bf16.msra.mxu0 0
          %875 = vmatprep.subr.bf16.mxu0 0
          %876 = vmatpush1.bf16.msra.mxu0 0
          %877 = vmatprep.subr.bf16.mxu0 0
          %878 = vmatpush1.bf16.msra.mxu0 0
          %879 = vmatprep.mubr.bf16.mxu0 0
          %880 = vmatmul.mubr.bf16.gmra.mrb[0].mxu0 %v842
          %v881 = vpop.f32.mrb[0].mxu0
          %v882 = vadd.f32 0.0, %v881
          %v883 = vpop.f32.mrb[0].mxu0
          %v884 = vpop.f32.mrb[0].mxu0
          %v885 = vpop.f32.mrb[0].mxu0
          %886 = vdwg.mxu0
          %v887 = vadd.f32 %v838, %v882
          %vm888 = vcmask 261120
          %889 = vst.msk [vmem:[#allocation5] sm:$0xff] %vm888, %v887
        $region96: #{tpu_custom_call.1} parent=51 // pred_fallthru
          _
        %p890 = scmp.eq.s32.totalorder %s38, 3
        %p891 = pnand %p890, %p527
        %p892 = pneg %p891
        // Predicated region
        $region97: #{tpu_custom_call.1} parent=51 // pred_check
          _
        $region98: #{tpu_custom_call.1} parent=51 // pred_check_branch
          %894 = sbr.rel (%p891) target = $region100
        $region99: #{tpu_custom_call.1} parent=51 // pred_region
          %v895 = vld [vmem:[#allocation5] sm:$0xff]
          %vm896 = vcmask 261120
          %897 = vst.msk [vmem:[%s524] sm:$0xff] %vm896, %v895
        $region100: #{tpu_custom_call.1} parent=51 // pred_fallthru
          _
        %s898 = sand.u32 %s266, 1
        %s899 = scalar_lea.sflag [#allocation8], %s898
        %s900 = sand.u32 %s266, 1
        %s901 = smul.addr %s900, 8
        %s902 = scalar_lea.vmem [#allocation19], %s901
        // Predicated region
        $region101: #{tpu_custom_call.1} parent=51 // pred_check
          %p903 = pneg %p276
        $region102: #{tpu_custom_call.1} parent=51 // pred_check_branch
          %905 = sbr.rel (%p903) target = $region104
        $region103: #{tpu_custom_call.1} parent=51 // pred_region
          %s907 = ssub.s32 128, 128
          %908 = vsyncadd %s899, %s907
          %s909 = sadd.s32 %s37, %s36
          %s910 = smul.addr %s909, 128
          %s911 = scalar_lea.hbm %s8, %s910
          %s913 = sshll.u32 %s902, 4
          %s914 = int_to_ptr.vmem [resolvable:$true] %s913
          %916 = dma.vmem_to_hbm [thread:$0]  %s914, 128, %s911, %s899
        $region104: #{tpu_custom_call.1} parent=51 // pred_fallthru
          _
      $region52: #{tpu_custom_call.1} parent=5 // pred_fallthru
        _
      %p917 = scmp.le.s32.totalorder 2, %s25
      // Predicated region
      $region105: #{tpu_custom_call.1} parent=5 // pred_check
        %p918 = pneg %p917
      $region106: #{tpu_custom_call.1} parent=5 // pred_check_branch
        %920 = sbr.rel (%p918) target = $region108
      $region107: #{tpu_custom_call.1} parent=5 // pred_region
        %s921 = ssub.s32 %s25, 2
        // Predicated region
        $region109: #{tpu_custom_call.1} parent=107 // pred_check
          %p922 = pneg %p282
        $region110: #{tpu_custom_call.1} parent=107 // pred_check_branch
          %924 = sbr.rel (%p922) target = $region112
        $region111: #{tpu_custom_call.1} parent=107 // pred_region
          %s925 = sand.u32 %s267, 1
          %s926 = scalar_lea.sflag [#allocation8], %s925
          %s927 = sand.u32 %s267, 1
          %s928 = smul.addr %s927, 8
          %s929 = scalar_lea.vmem [#allocation19], %s928
          %930 = dma.done %s926, 128
        $region112: #{tpu_custom_call.1} parent=107 // pred_fallthru
          _
      $region108: #{tpu_custom_call.1} parent=5 // pred_fallthru
        _
    $region6: #{tpu_custom_call.1} parent=1 // loop_footer
      %s29 = sadd.s32 1, %s25
    $region7: #{tpu_custom_call.1} parent=1 // loop_footer_branch
      %24 = sbr.rel target = $region3
    $region8: #{tpu_custom_call.1} parent=1 // loop_exit
      _
    %931 = vsyncpa [#allocation7], 1
    %s932 = scalar_lea.sflag [#allocation7], 1
    %933 = vsyncpa %s932, 1
    %934 = vsyncpa [#allocation10], 1
    %s935 = scalar_lea.sflag [#allocation10], 1
    %936 = vsyncpa %s935, 1
    %937 = vsyncpa [#allocation13], 1
    %938 = vsyncpa [#allocation16], 1
    %939 = vsyncpa [#allocation8], 1
    %s940 = scalar_lea.sflag [#allocation8], 1
    %941 = vsyncpa %s940, 1

</llo_original>
